<compile_context>
chip_gen: v5e
topology: v5e:2x2
jax: 0.10.0
libtpu: 0.0.40
codegen_flags: <defaults>
</compile_context>

<pallas_src>
import functools

import jax
import jax.numpy as jnp
from jax.experimental import pallas as pl
from jax.experimental.pallas import tpu as pltpu

EPS = 1e-10
W_LI = 1.0
W_EN = 1.0
W_CE = 1.0
LANE = 128


def _round_up(x, m):
    return (x + m - 1) // m * m


def _vmem_footprint(block_b, H, NP, K):
    """Rough double-buffered VMEM bytes for one grid step."""
    streams = 2 * (block_b * H * 2        # h (bf16)
                   + block_b * NP * 2     # noise (bf16)
                   + block_b * NP * 4     # z out (f32)
                   + 8 * LANE * 4)        # loss partial out
    consts = 2 * (H * 3 * NP * 2          # fused weight (bf16)
                  + 3 * NP * 4            # fused bias (f32)
                  + NP * K * 2            # classifier W2 (bf16)
                  + 2 * NP * K * 4        # inv_var, m2 (f32)
                  + 3 * K * 4)            # b_c2, term1_half, c
    live = block_b * 8 * NP * 4 + 12 * block_b * K * 4   # in-kernel temporaries
    return streams + consts + live


def _pick_block_b(B, H, NP, K, budget_bytes):
    """Largest batch tile that divides B and fits the per-step VMEM budget."""
    cands = [c for c in (1024, 512, 256, 128, 64, 32, 16) if B % c == 0] + [B]
    for tb in cands:
        if _vmem_footprint(tb, H, NP, K) <= budget_bytes:
            return tb
    return cands[-1]


def gmvae_kernel(h_ref, noise_ref, w_h_ref, b_h_ref, w_c2_ref, b_c2_ref,
                 inv_var_ref, m2_ref, t1h_ref, c_ref, z_ref, loss_ref):
    TB = h_ref.shape[0]
    NP = noise_ref.shape[1]              # latent dim padded to a multiple of 128

    h = h_ref[...]                       # [TB, H]  bf16 (cast in wrapper)
    noise = noise_ref[...].astype(jnp.float32)   # [TB, NP] (pad lanes are 0)

    # ---- single fused bf16 MXU dot for mu / log_var / classifier-hidden -----
    fused = jnp.dot(h, w_h_ref[...],
                    preferred_element_type=jnp.float32) + b_h_ref[...]
    mu = fused[:, 0 * NP:1 * NP]                      # [TB, NP] (pad = 0)
    log_var = fused[:, 1 * NP:2 * NP]                 # [TB, NP] (pad = 0)
    hid = jnp.maximum(fused[:, 2 * NP:3 * NP], 0.0)   # ReLU     (pad = 0)

    sigma = jnp.exp(0.5 * log_var)                    # pad lanes -> 1
    z = mu + sigma * noise                            # pad lanes -> 0
    z_ref[...] = z                                    # lane-dense full store

    # ---- classifier logits -> pc_z = softmax(logits)  (bf16 MXU dot) --------
    logits = jnp.dot(hid.astype(jnp.bfloat16), w_c2_ref[...],
                     preferred_element_type=jnp.float32) + b_c2_ref[...]
    logits = logits - jnp.max(logits, axis=-1, keepdims=True)
    e_logits = jnp.exp(logits)
    pc_z = e_logits * pl.reciprocal(
        jnp.sum(e_logits, axis=-1, keepdims=True), approx=True)   # [TB, K]

    # ---- precomputed GMM constants (hoisted to prepare_params) ---------------
    inv_var = inv_var_ref[...]           # [NP, K]  1/std^2, pad rows = 0
    m2 = m2_ref[...]                     # [NP, K]  -2*mean/std^2, pad rows = 0
    t1h = t1h_ref[...]                   # [1, K]   0.5 * sum(-log(std^2*2pi))
    c = c_ref[...]                       # [1, K]   sum(mean^2/std^2)

    # quad(x) = (x*x)@inv_var + x@m2 + c ;  ev = sigma^2 @ inv_var.
    # Two MXU dots total: stack squared terms (z^2, mu^2, sigma^2) and linear
    # terms (z, mu) so every dot shares the fixed MXU push/pop overhead.
    sq = jnp.concatenate([z * z, mu * mu, sigma * sigma], axis=0)  # [3TB, NP]
    lin = jnp.concatenate([z, mu], axis=0)                          # [2TB, NP]
    dot_sq = jnp.dot(sq, inv_var, preferred_element_type=jnp.float32)   # [3TB,K]
    dot_lin = jnp.dot(lin, m2, preferred_element_type=jnp.float32)      # [2TB,K]
    quad_z = dot_sq[:TB] + dot_lin[:TB] + c
    quad_mu = dot_sq[TB:2 * TB] + dot_lin[TB:] + c
    ev = dot_sq[2 * TB:]                                            # sigma^2/std^2

    # ---- compute_prior(z)  (value-only; torch wraps it in no_grad) ----------
    prior_log = t1h - 0.5 * quad_z
    prior_log = prior_log - jnp.max(prior_log, axis=-1, keepdims=True)  # overflow guard
    prob = jnp.exp(prior_log)
    pc = prob * pl.reciprocal(jnp.sum(prob, axis=-1, keepdims=True) + EPS,
                              approx=True)
    # torch then applies F.softmax(pc, dim=-1) on top (double normalization).
    pc = pc - jnp.max(pc, axis=-1, keepdims=True)
    e_pc = jnp.exp(pc)
    pc = e_pc * pl.reciprocal(jnp.sum(e_pc, axis=-1, keepdims=True), approx=True)

    # ---- compute_log_likelihood(mu, log_var, pc_z) ---------------------------
    prob_ll = t1h - 0.5 * (quad_mu + ev)               # [TB, K]

    # ---- single fused reduction: w_li*LL + w_en*H + w_ce*CE (block partial) --
    combined = (W_LI * prob_ll * pc_z
                - W_EN * pc_z * jnp.log(pc_z + EPS)
                - W_CE * pc_z * jnp.log(pc + EPS))
    loss_ref[...] = jnp.full(loss_ref.shape, jnp.sum(combined), jnp.float32)


def prepare_params(params):
    """One-time parameter prep (fused/padded weights + GMM constants)."""
    N, K = params["gmm_mean"].shape
    NP = _round_up(N, LANE)
    pad_n = NP - N
    f32 = jnp.float32

    def pad_cols(a):  # [rows, N] -> [rows, NP]
        return jnp.pad(a, ((0, 0), (0, pad_n)))

    w_hcat = jnp.concatenate([pad_cols(params["w_mu"]),
                              pad_cols(params["w_sig"]),
                              pad_cols(params["w_c1"])],
                             axis=1).astype(jnp.bfloat16)          # [H, 3*NP]
    b_hcat = jnp.concatenate([pad_cols(params["b_mu"]),
                              pad_cols(params["b_sig"]),
                              pad_cols(params["b_c1"])],
                             axis=1).astype(f32)                   # [1, 3*NP]
    w_c2 = jnp.pad(params["w_c2"],
                   ((0, pad_n), (0, 0))).astype(jnp.bfloat16)      # [NP, K]
    b_c2 = params["b_c2"].astype(f32)                              # [1, K]

    mean = params["gmm_mean"].astype(f32)                          # [N, K]
    std = params["gmm_std"].astype(f32)
    var = std * std
    inv_var = 1.0 / var                                            # exact reciprocal
    t1h = 0.5 * jnp.sum(-jnp.log(var * (2.0 * jnp.pi)),
                        axis=0, keepdims=True)                     # [1, K]
    c = jnp.sum(mean * mean * inv_var, axis=0, keepdims=True)      # [1, K]
    m2 = -2.0 * mean * inv_var                                     # [N, K]

    return {
        "w_hcat": w_hcat, "b_hcat": b_hcat, "w_c2": w_c2, "b_c2": b_c2,
        "inv_var": jnp.pad(inv_var, ((0, pad_n), (0, 0))),         # pad rows 0
        "m2": jnp.pad(m2, ((0, pad_n), (0, 0))),                   # pad rows 0
        "t1h": t1h, "c": c,
    }


def gmvae_forward(h, noise, prepped, *, latent_dim, block_b=None,
                  vmem_budget=32 << 20):
    B, H = h.shape
    NP, K = prepped["inv_var"].shape
    N = latent_dim
    pad_n = NP - N

    if block_b is None:
        block_b = _pick_block_b(B, H, NP, K, vmem_budget)
    assert B % block_b == 0
    G = B // block_b

    f32 = jnp.float32
    h_bf16 = h.astype(jnp.bfloat16)                                # halve h DMA
    noise_p = jnp.pad(noise, ((0, 0), (0, pad_n))).astype(jnp.bfloat16)

    footprint = _vmem_footprint(block_b, H, NP, K)
    vmem_limit = int(min(64 << 20, max(2 * footprint, 16 << 20)))

    matmul_flops = (2 * B * H * 3 * NP          # fused h matmul
                    + 2 * B * NP * K            # classifier layer 2
                    + 2 * 3 * B * NP * K        # stacked squares @ inv_var
                    + 2 * 2 * B * NP * K)       # stacked [z; mu] @ m2
    cost = pl.CostEstimate(
        flops=int(matmul_flops + 30 * B * NP + 30 * B * K),
        transcendentals=int(B * NP + 6 * B * K),
        bytes_accessed=int(2 * B * H + 2 * B * NP + 4 * B * NP
                           + 2 * H * 3 * NP + 4 * 3 * NP
                           + 2 * NP * K + 8 * NP * K + 12 * K
                           + 4 * G * 8 * LANE),
    )

    z_pad, loss_parts = pl.pallas_call(
        gmvae_kernel,
        out_shape=(jax.ShapeDtypeStruct((B, NP), f32),
                   jax.ShapeDtypeStruct((G, 8, LANE), f32)),
        grid=(G,),
        in_specs=[
            pl.BlockSpec((block_b, H), lambda i: (i, 0)),      # h (bf16)
            pl.BlockSpec((block_b, NP), lambda i: (i, 0)),     # noise (bf16, padded)
            pl.BlockSpec((H, 3 * NP), lambda i: (0, 0)),       # fused weights (bf16)
            pl.BlockSpec((1, 3 * NP), lambda i: (0, 0)),       # fused biases
            pl.BlockSpec((NP, K), lambda i: (0, 0)),           # classifier W2 (bf16)
            pl.BlockSpec((1, K), lambda i: (0, 0)),            # classifier b2
            pl.BlockSpec((NP, K), lambda i: (0, 0)),           # inv_var
            pl.BlockSpec((NP, K), lambda i: (0, 0)),           # -2*mean*inv_var
            pl.BlockSpec((1, K), lambda i: (0, 0)),            # 0.5*term1
            pl.BlockSpec((1, K), lambda i: (0, 0)),            # c = sum(mean^2/var)
        ],
        out_specs=(
            pl.BlockSpec((block_b, NP), lambda i: (i, 0)),     # z (lane-dense)
            pl.BlockSpec((1, 8, LANE), lambda i: (i, 0, 0)),   # loss partials
        ),
        compiler_params=pltpu.CompilerParams(
            dimension_semantics=("parallel",),
            vmem_limit_bytes=vmem_limit),
        cost_estimate=cost,
    )(h_bf16, noise_p, prepped["w_hcat"], prepped["b_hcat"],
      prepped["w_c2"], prepped["b_c2"], prepped["inv_var"], prepped["m2"],
      prepped["t1h"], prepped["c"])

    z = z_pad[:, :N]
    loss = jnp.sum(loss_parts[:, 0, 0]) / (B * K)   # the three torch.means
    return z, loss


def init_params(key, enc_hid, latent_dim, num_clusters):
    """Parameter shapes matching the module; PyTorch-default Linear init,
    GMM mean/std = zeros/ones as in GMM.__init__."""
    ks = jax.random.split(key, 8)

    def linear(kw, kb, fan_in, fan_out):
        bound = 1.0 / jnp.sqrt(fan_in)
        w = jax.random.uniform(kw, (fan_in, fan_out), jnp.float32, -bound, bound)
        b = jax.random.uniform(kb, (1, fan_out), jnp.float32, -bound, bound)
        return w, b

    w_mu, b_mu = linear(ks[0], ks[1], enc_hid, latent_dim)
    w_sig, b_sig = linear(ks[2], ks[3], enc_hid, latent_dim)
    w_c1, b_c1 = linear(ks[4], ks[5], enc_hid, latent_dim)
    w_c2, b_c2 = linear(ks[6], ks[7], latent_dim, num_clusters)

    return {
        "w_mu": w_mu, "b_mu": b_mu,
        "w_sig": w_sig, "b_sig": b_sig,
        "w_c1": w_c1, "b_c1": b_c1,
        "w_c2": w_c2, "b_c2": b_c2,
        "gmm_mean": jnp.zeros((latent_dim, num_clusters), jnp.float32),
        "gmm_std": jnp.ones((latent_dim, num_clusters), jnp.float32),
    }


if __name__ == "__main__":
    B, ENC_HID, LATENT_DIM, NUM_CLUSTERS = 8, 32, 16, 8

    key = jax.random.PRNGKey(0)
    k_h, k_noise, k_param = jax.random.split(key, 3)

    h = jax.random.normal(k_h, (B, ENC_HID), jnp.float32)
    # torch.randn_like(sigma) equivalent, drawn deterministically here.
    # TODO(synk): in-kernel pltpu.stateful_normal would remove this stream but
    # changes bit-exact reproducibility of the noise draw.
    noise = jax.random.normal(k_noise, (B, LATENT_DIM), jnp.float32)
    params = init_params(k_param, ENC_HID, LATENT_DIM, NUM_CLUSTERS)

    prepped = prepare_params(params)        # one-time parameter prep (hoisted)
    fwd = jax.jit(functools.partial(gmvae_forward, latent_dim=LATENT_DIM))
    z, loss = fwd(h, noise, prepped)
    jax.block_until_ready((z, loss))

    assert z.shape == (B, LATENT_DIM)
    assert jnp.isfinite(loss)
    print("KERNEL_OK")
</pallas_src>

<mosaic_0001>
module attributes {stable_mosaic.version = 11 : i64} {
  func.func @gmvae_kernel(%arg0: i32, %arg1: memref<8x32xbf16, #tpu.memory_space<vmem>>, %arg2: memref<8x128xbf16, #tpu.memory_space<vmem>>, %arg3: memref<32x384xbf16, #tpu.memory_space<vmem>>, %arg4: memref<1x384xf32, #tpu.memory_space<vmem>>, %arg5: memref<128x8xbf16, #tpu.memory_space<vmem>>, %arg6: memref<1x8xf32, #tpu.memory_space<vmem>>, %arg7: memref<128x8xf32, #tpu.memory_space<vmem>>, %arg8: memref<128x8xf32, #tpu.memory_space<vmem>>, %arg9: memref<1x8xf32, #tpu.memory_space<vmem>>, %arg10: memref<1x8xf32, #tpu.memory_space<vmem>>, %arg11: memref<8x128xf32, #tpu.memory_space<vmem>>, %arg12: memref<1x8x128xf32, #tpu.memory_space<vmem>>) attributes {dimension_semantics = [#tpu.dimension_semantics<parallel>], iteration_bounds = array<i64: 1>, scalar_prefetch = 0 : i64, scratch_operands = 0 : i64, tpu.core_type = #tpu.core_type<tc>, window_params = [{transform_indices = @transform_0, window_bounds = array<i64: 8, 32>}, {transform_indices = @transform_1, window_bounds = array<i64: 8, 128>}, {pipeline_mode = #tpu.pipeline_mode<synchronous>, transform_indices = @transform_2, window_bounds = array<i64: 32, 384>}, {pipeline_mode = #tpu.pipeline_mode<synchronous>, transform_indices = @transform_3, window_bounds = array<i64: 1, 384>}, {pipeline_mode = #tpu.pipeline_mode<synchronous>, transform_indices = @transform_4, window_bounds = array<i64: 128, 8>}, {pipeline_mode = #tpu.pipeline_mode<synchronous>, transform_indices = @transform_5, window_bounds = array<i64: 1, 8>}, {pipeline_mode = #tpu.pipeline_mode<synchronous>, transform_indices = @transform_6, window_bounds = array<i64: 128, 8>}, {pipeline_mode = #tpu.pipeline_mode<synchronous>, transform_indices = @transform_7, window_bounds = array<i64: 128, 8>}, {pipeline_mode = #tpu.pipeline_mode<synchronous>, transform_indices = @transform_8, window_bounds = array<i64: 1, 8>}, {pipeline_mode = #tpu.pipeline_mode<synchronous>, transform_indices = @transform_9, window_bounds = array<i64: 1, 8>}, {transform_indices = @transform_10, window_bounds = array<i64: 8, 128>}, {transform_indices = @transform_11, window_bounds = array<i64: 1, 8, 128>}]} {
    %c0 = arith.constant 0 : index
    %c0_0 = arith.constant 0 : index
    %0 = vector.load %arg1[%c0, %c0_0] : memref<8x32xbf16, #tpu.memory_space<vmem>>, vector<8x32xbf16>
    %c0_1 = arith.constant 0 : index
    %c0_2 = arith.constant 0 : index
    %1 = vector.load %arg2[%c0_1, %c0_2] : memref<8x128xbf16, #tpu.memory_space<vmem>>, vector<8x128xbf16>
    %2 = arith.extf %1 : vector<8x128xbf16> to vector<8x128xf32>
    %c0_3 = arith.constant 0 : index
    %c0_4 = arith.constant 0 : index
    %3 = vector.load %arg3[%c0_3, %c0_4] : memref<32x384xbf16, #tpu.memory_space<vmem>>, vector<32x384xbf16>
    %cst = arith.constant dense<0.000000e+00> : vector<8x384xf32>
    %4 = tpu.matmul %0, %3, %cst {dimension_numbers = #tpu.dot_dimension_numbers<[1], [0], [0], [1], [0, 0, 1, 1], [], []>} : vector<8x32xbf16>, vector<32x384xbf16>, vector<8x384xf32> -> vector<8x384xf32>
    %c0_5 = arith.constant 0 : index
    %c0_6 = arith.constant 0 : index
    %5 = vector.load %arg4[%c0_5, %c0_6] : memref<1x384xf32, #tpu.memory_space<vmem>>, vector<1x384xf32>
    %6 = vector.broadcast %5 : vector<1x384xf32> to vector<8x384xf32>
    %7 = arith.addf %4, %6 : vector<8x384xf32>
    %8 = vector.extract_strided_slice %7 {offsets = [0, 0], sizes = [8, 128], strides = [1, 1]} : vector<8x384xf32> to vector<8x128xf32>
    %9 = vector.extract_strided_slice %7 {offsets = [0, 128], sizes = [8, 128], strides = [1, 1]} : vector<8x384xf32> to vector<8x128xf32>
    %10 = vector.extract_strided_slice %7 {offsets = [0, 256], sizes = [8, 128], strides = [1, 1]} : vector<8x384xf32> to vector<8x128xf32>
    %cst_7 = arith.constant 0.000000e+00 : f32
    %11 = vector.broadcast %cst_7 : f32 to vector<8x128xf32>
    %12 = arith.maximumf %10, %11 : vector<8x128xf32>
    %cst_8 = arith.constant 5.000000e-01 : f32
    %13 = vector.broadcast %cst_8 : f32 to vector<8x128xf32>
    %14 = arith.mulf %13, %9 : vector<8x128xf32>
    %15 = math.exp %14 : vector<8x128xf32>
    %16 = arith.mulf %15, %2 : vector<8x128xf32>
    %17 = arith.addf %8, %16 : vector<8x128xf32>
    %c0_9 = arith.constant 0 : index
    %c0_10 = arith.constant 0 : index
    %18 = vector.load %arg11[%c0_9, %c0_10] : memref<8x128xf32, #tpu.memory_space<vmem>>, vector<8x128xf32>
    tpu.vector_store %arg11[%c0_9, %c0_10], %17 {strides = array<i32>} : memref<8x128xf32, #tpu.memory_space<vmem>>, vector<8x128xf32>,
    %19 = arith.truncf %12 : vector<8x128xf32> to vector<8x128xbf16>
    %c0_11 = arith.constant 0 : index
    %c0_12 = arith.constant 0 : index
    %20 = vector.load %arg5[%c0_11, %c0_12] : memref<128x8xbf16, #tpu.memory_space<vmem>>, vector<128x8xbf16>
    %cst_13 = arith.constant dense<0.000000e+00> : vector<8x8xf32>
    %21 = tpu.matmul %19, %20, %cst_13 {dimension_numbers = #tpu.dot_dimension_numbers<[1], [0], [0], [1], [0, 0, 1, 1], [], []>} : vector<8x128xbf16>, vector<128x8xbf16>, vector<8x8xf32> -> vector<8x8xf32>
    %c0_14 = arith.constant 0 : index
    %c0_15 = arith.constant 0 : index
    %22 = vector.load %arg6[%c0_14, %c0_15] : memref<1x8xf32, #tpu.memory_space<vmem>>, vector<1x8xf32>
    %23 = vector.broadcast %22 : vector<1x8xf32> to vector<8x8xf32>
    %24 = arith.addf %21, %23 : vector<8x8xf32>
    %cst_16 = arith.constant dense<0xFF800000> : vector<8xf32>
    %25 = vector.multi_reduction <maximumf>, %24, %cst_16 [1] : vector<8x8xf32> to vector<8xf32>
    %26 = vector.shape_cast %25 : vector<8xf32> to vector<8x1xf32>
    %27 = vector.broadcast %26 : vector<8x1xf32> to vector<8x8xf32>
    %28 = arith.subf %24, %27 : vector<8x8xf32>
    %29 = math.exp %28 : vector<8x8xf32>
    %cst_17 = arith.constant dense<0.000000e+00> : vector<8xf32>
    %30 = vector.multi_reduction <add>, %29, %cst_17 [1] : vector<8x8xf32> to vector<8xf32>
    %31 = vector.shape_cast %30 : vector<8xf32> to vector<8x1xf32>
    %32 = tpu.reciprocal %31 {approx = true} : vector<8x1xf32> -> vector<8x1xf32>
    %33 = vector.broadcast %32 : vector<8x1xf32> to vector<8x8xf32>
    %34 = arith.mulf %29, %33 : vector<8x8xf32>
    %c0_18 = arith.constant 0 : index
    %c0_19 = arith.constant 0 : index
    %35 = vector.load %arg7[%c0_18, %c0_19] : memref<128x8xf32, #tpu.memory_space<vmem>>, vector<128x8xf32>
    %c0_20 = arith.constant 0 : index
    %c0_21 = arith.constant 0 : index
    %36 = vector.load %arg8[%c0_20, %c0_21] : memref<128x8xf32, #tpu.memory_space<vmem>>, vector<128x8xf32>
    %c0_22 = arith.constant 0 : index
    %c0_23 = arith.constant 0 : index
    %37 = vector.load %arg9[%c0_22, %c0_23] : memref<1x8xf32, #tpu.memory_space<vmem>>, vector<1x8xf32>
    %c0_24 = arith.constant 0 : index
    %c0_25 = arith.constant 0 : index
    %38 = vector.load %arg10[%c0_24, %c0_25] : memref<1x8xf32, #tpu.memory_space<vmem>>, vector<1x8xf32>
    %39 = arith.mulf %17, %17 : vector<8x128xf32>
    %40 = arith.mulf %8, %8 : vector<8x128xf32>
    %41 = arith.mulf %15, %15 : vector<8x128xf32>
    %42 = tpu.concatenate %39, %40, %41 in 0 : vector<8x128xf32>, vector<8x128xf32>, vector<8x128xf32> -> vector<24x128xf32>
    %43 = tpu.concatenate %17, %8 in 0 : vector<8x128xf32>, vector<8x128xf32> -> vector<16x128xf32>
    %cst_26 = arith.constant dense<0.000000e+00> : vector<24x8xf32>
    %44 = tpu.matmul %42, %35, %cst_26 {dimension_numbers = #tpu.dot_dimension_numbers<[1], [0], [0], [1], [0, 0, 1, 1], [], []>} : vector<24x128xf32>, vector<128x8xf32>, vector<24x8xf32> -> vector<24x8xf32>
    %cst_27 = arith.constant dense<0.000000e+00> : vector<16x8xf32>
    %45 = tpu.matmul %43, %36, %cst_27 {dimension_numbers = #tpu.dot_dimension_numbers<[1], [0], [0], [1], [0, 0, 1, 1], [], []>} : vector<16x128xf32>, vector<128x8xf32>, vector<16x8xf32> -> vector<16x8xf32>
    %46 = vector.extract_strided_slice %44 {offsets = [0, 0], sizes = [8, 8], strides = [1, 1]} : vector<24x8xf32> to vector<8x8xf32>
    %47 = vector.extract_strided_slice %45 {offsets = [0, 0], sizes = [8, 8], strides = [1, 1]} : vector<16x8xf32> to vector<8x8xf32>
    %48 = arith.addf %46, %47 : vector<8x8xf32>
    %49 = vector.broadcast %38 : vector<1x8xf32> to vector<8x8xf32>
    %50 = arith.addf %48, %49 : vector<8x8xf32>
    %51 = vector.extract_strided_slice %44 {offsets = [8, 0], sizes = [8, 8], strides = [1, 1]} : vector<24x8xf32> to vector<8x8xf32>
    %52 = vector.extract_strided_slice %45 {offsets = [8, 0], sizes = [8, 8], strides = [1, 1]} : vector<16x8xf32> to vector<8x8xf32>
    %53 = arith.addf %51, %52 : vector<8x8xf32>
    %54 = vector.broadcast %38 : vector<1x8xf32> to vector<8x8xf32>
    %55 = arith.addf %53, %54 : vector<8x8xf32>
    %56 = vector.extract_strided_slice %44 {offsets = [16, 0], sizes = [8, 8], strides = [1, 1]} : vector<24x8xf32> to vector<8x8xf32>
    %cst_28 = arith.constant 5.000000e-01 : f32
    %57 = vector.broadcast %cst_28 : f32 to vector<8x8xf32>
    %58 = arith.mulf %57, %50 : vector<8x8xf32>
    %59 = vector.broadcast %37 : vector<1x8xf32> to vector<8x8xf32>
    %60 = arith.subf %59, %58 : vector<8x8xf32>
    %cst_29 = arith.constant dense<0xFF800000> : vector<8xf32>
    %61 = vector.multi_reduction <maximumf>, %60, %cst_29 [1] : vector<8x8xf32> to vector<8xf32>
    %62 = vector.shape_cast %61 : vector<8xf32> to vector<8x1xf32>
    %63 = vector.broadcast %62 : vector<8x1xf32> to vector<8x8xf32>
    %64 = arith.subf %60, %63 : vector<8x8xf32>
    %65 = math.exp %64 : vector<8x8xf32>
    %cst_30 = arith.constant dense<0.000000e+00> : vector<8xf32>
    %66 = vector.multi_reduction <add>, %65, %cst_30 [1] : vector<8x8xf32> to vector<8xf32>
    %67 = vector.shape_cast %66 : vector<8xf32> to vector<8x1xf32>
    %cst_31 = arith.constant 1.000000e-10 : f32
    %68 = vector.broadcast %cst_31 : f32 to vector<8x1xf32>
    %69 = arith.addf %67, %68 : vector<8x1xf32>
    %70 = tpu.reciprocal %69 {approx = true} : vector<8x1xf32> -> vector<8x1xf32>
    %71 = vector.broadcast %70 : vector<8x1xf32> to vector<8x8xf32>
    %72 = arith.mulf %65, %71 : vector<8x8xf32>
    %cst_32 = arith.constant dense<0xFF800000> : vector<8xf32>
    %73 = vector.multi_reduction <maximumf>, %72, %cst_32 [1] : vector<8x8xf32> to vector<8xf32>
    %74 = vector.shape_cast %73 : vector<8xf32> to vector<8x1xf32>
    %75 = vector.broadcast %74 : vector<8x1xf32> to vector<8x8xf32>
    %76 = arith.subf %72, %75 : vector<8x8xf32>
    %77 = math.exp %76 : vector<8x8xf32>
    %cst_33 = arith.constant dense<0.000000e+00> : vector<8xf32>
    %78 = vector.multi_reduction <add>, %77, %cst_33 [1] : vector<8x8xf32> to vector<8xf32>
    %79 = vector.shape_cast %78 : vector<8xf32> to vector<8x1xf32>
    %80 = tpu.reciprocal %79 {approx = true} : vector<8x1xf32> -> vector<8x1xf32>
    %81 = vector.broadcast %80 : vector<8x1xf32> to vector<8x8xf32>
    %82 = arith.mulf %77, %81 : vector<8x8xf32>
    %83 = arith.addf %55, %56 : vector<8x8xf32>
    %cst_34 = arith.constant 5.000000e-01 : f32
    %84 = vector.broadcast %cst_34 : f32 to vector<8x8xf32>
    %85 = arith.mulf %84, %83 : vector<8x8xf32>
    %86 = vector.broadcast %37 : vector<1x8xf32> to vector<8x8xf32>
    %87 = arith.subf %86, %85 : vector<8x8xf32>
    %cst_35 = arith.constant 1.000000e+00 : f32
    %88 = vector.broadcast %cst_35 : f32 to vector<8x8xf32>
    %89 = arith.mulf %88, %87 : vector<8x8xf32>
    %90 = arith.mulf %89, %34 : vector<8x8xf32>
    %cst_36 = arith.constant 1.000000e+00 : f32
    %91 = vector.broadcast %cst_36 : f32 to vector<8x8xf32>
    %92 = arith.mulf %91, %34 : vector<8x8xf32>
    %cst_37 = arith.constant 1.000000e-10 : f32
    %93 = vector.broadcast %cst_37 : f32 to vector<8x8xf32>
    %94 = arith.addf %34, %93 : vector<8x8xf32>
    %95 = math.log %94 : vector<8x8xf32>
    %96 = arith.mulf %92, %95 : vector<8x8xf32>
    %97 = arith.subf %90, %96 : vector<8x8xf32>
    %cst_38 = arith.constant 1.000000e+00 : f32
    %98 = vector.broadcast %cst_38 : f32 to vector<8x8xf32>
    %99 = arith.mulf %98, %34 : vector<8x8xf32>
    %cst_39 = arith.constant 1.000000e-10 : f32
    %100 = vector.broadcast %cst_39 : f32 to vector<8x8xf32>
    %101 = arith.addf %82, %100 : vector<8x8xf32>
    %102 = math.log %101 : vector<8x8xf32>
    %103 = arith.mulf %99, %102 : vector<8x8xf32>
    %104 = arith.subf %97, %103 : vector<8x8xf32>
    %105 = vector.shape_cast %104 : vector<8x8xf32> to vector<1x8x8xf32>
    %cst_40 = arith.constant dense<0.000000e+00> : vector<1xf32>
    %106 = vector.multi_reduction <add>, %105, %cst_40 [1, 2] : vector<1x8x8xf32> to vector<1xf32>
    %107 = vector.shape_cast %106 : vector<1xf32> to vector<1x1x1xf32>
    %108 = vector.extract %107[0, 0, 0] : f32 from vector<1x1x1xf32>
    %109 = vector.broadcast %108 : f32 to vector<1x8x128xf32>
    %c0_41 = arith.constant 0 : index
    %c0_42 = arith.constant 0 : index
    %c0_43 = arith.constant 0 : index
    %110 = vector.load %arg12[%c0_41, %c0_42, %c0_43] : memref<1x8x128xf32, #tpu.memory_space<vmem>>, vector<1x8x128xf32>
    tpu.vector_store %arg12[%c0_41, %c0_42, %c0_43], %109 {strides = array<i32>} : memref<1x8x128xf32, #tpu.memory_space<vmem>>, vector<1x8x128xf32>,
    return
  }
  func.func @transform_0(%arg0: i32) -> (i32, i32) {
    %c0_i32 = arith.constant 0 : i32
    %c0_i32_0 = arith.constant 0 : i32
    return %arg0, %c0_i32 : i32, i32
  }
  func.func @transform_1(%arg0: i32) -> (i32, i32) {
    %c0_i32 = arith.constant 0 : i32
    %c0_i32_0 = arith.constant 0 : i32
    return %arg0, %c0_i32 : i32, i32
  }
  func.func @transform_2(%arg0: i32) -> (i32, i32) {
    %c0_i32 = arith.constant 0 : i32
    %c0_i32_0 = arith.constant 0 : i32
    %c0_i32_1 = arith.constant 0 : i32
    return %c0_i32, %c0_i32_0 : i32, i32
  }
  func.func @transform_3(%arg0: i32) -> (i32, i32) {
    %c0_i32 = arith.constant 0 : i32
    %c0_i32_0 = arith.constant 0 : i32
    %c0_i32_1 = arith.constant 0 : i32
    return %c0_i32, %c0_i32_0 : i32, i32
  }
  func.func @transform_4(%arg0: i32) -> (i32, i32) {
    %c0_i32 = arith.constant 0 : i32
    %c0_i32_0 = arith.constant 0 : i32
    %c0_i32_1 = arith.constant 0 : i32
    return %c0_i32, %c0_i32_0 : i32, i32
  }
  func.func @transform_5(%arg0: i32) -> (i32, i32) {
    %c0_i32 = arith.constant 0 : i32
    %c0_i32_0 = arith.constant 0 : i32
    %c0_i32_1 = arith.constant 0 : i32
    return %c0_i32, %c0_i32_0 : i32, i32
  }
  func.func @transform_6(%arg0: i32) -> (i32, i32) {
    %c0_i32 = arith.constant 0 : i32
    %c0_i32_0 = arith.constant 0 : i32
    %c0_i32_1 = arith.constant 0 : i32
    return %c0_i32, %c0_i32_0 : i32, i32
  }
  func.func @transform_7(%arg0: i32) -> (i32, i32) {
    %c0_i32 = arith.constant 0 : i32
    %c0_i32_0 = arith.constant 0 : i32
    %c0_i32_1 = arith.constant 0 : i32
    return %c0_i32, %c0_i32_0 : i32, i32
  }
  func.func @transform_8(%arg0: i32) -> (i32, i32) {
    %c0_i32 = arith.constant 0 : i32
    %c0_i32_0 = arith.constant 0 : i32
    %c0_i32_1 = arith.constant 0 : i32
    return %c0_i32, %c0_i32_0 : i32, i32
  }
  func.func @transform_9(%arg0: i32) -> (i32, i32) {
    %c0_i32 = arith.constant 0 : i32
    %c0_i32_0 = arith.constant 0 : i32
    %c0_i32_1 = arith.constant 0 : i32
    return %c0_i32, %c0_i32_0 : i32, i32
  }
  func.func @transform_10(%arg0: i32) -> (i32, i32) {
    %c0_i32 = arith.constant 0 : i32
    %c0_i32_0 = arith.constant 0 : i32
    return %arg0, %c0_i32 : i32, i32
  }
  func.func @transform_11(%arg0: i32) -> (i32, i32, i32) {
    %c0_i32 = arith.constant 0 : i32
    %c0_i32_0 = arith.constant 0 : i32
    %c0_i32_1 = arith.constant 0 : i32
    return %arg0, %c0_i32, %c0_i32_0 : i32, i32, i32
  }
}

</mosaic_0001>

<llo_original>
// kernel: gmvae_forward.1
$region0: #{gmvae_forward.1}
  #allocation0 [shape = 'u32[]', space=smem, size = 0x4, offset = 0x4, fixed_abs, tag = 'smem constant byte address 0x4 - core index']
  #allocation1 [shape = 'u32[72,128]{1,0:T(1,128)}', space=vmem, size = 0x9000, scoped, tag = 'internal scratch']
  %s0 = inlined_call_operand.vmem [shape: bf16[8,32], index: 0, kind: input, shape index: {}]
  %s1 = inlined_call_operand.vmem [shape: bf16[8,128], index: 1, kind: input, shape index: {}]
  %s2 = inlined_call_operand.vmem [shape: bf16[32,384], index: 2, kind: input, shape index: {}]
  %s3 = inlined_call_operand.vmem [shape: f32[1,384], index: 3, kind: input, shape index: {}]
  %s4 = inlined_call_operand.vmem [shape: bf16[128,8], index: 4, kind: input, shape index: {}]
  %s5 = inlined_call_operand.vmem [shape: f32[1,8], index: 5, kind: input, shape index: {}]
  %s6 = inlined_call_operand.vmem [shape: f32[128,8], index: 6, kind: input, shape index: {}]
  %s7 = inlined_call_operand.vmem [shape: f32[128,8], index: 7, kind: input, shape index: {}]
  %s8 = inlined_call_operand.vmem [shape: f32[1,8], index: 8, kind: input, shape index: {}]
  %s9 = inlined_call_operand.vmem [shape: f32[1,8], index: 9, kind: input, shape index: {}]
  %s10 = inlined_call_operand.hbm [shape: f32[8,128], index: 10, kind: output, shape index: {0}]
  %s11 = inlined_call_operand.vmem [shape: f32[1,8,128], index: 11, kind: output, shape index: {1}]
  %12 = xla_tuple %s10, %s11
  %s13 = sld [smem:[#allocation0]]
  $region58: #{gmvae_forward.1} parent=0
    _
  %s15 = ssub.s32 1, %s13
  %s16 = scalar_select 0, %s15, %s13
  $region1: #{gmvae_forward.1} parent=0
    #allocation2 [shape = 'u8[4096]{0}', space=vmem, size = 0x1000, scoped, tag = 'output window, operand 0, single buffered']
    #allocation3 [shape = 's32[1]{0}', space=sflag, size = 0x4, scoped, tag = 'scoped memory for gmvae_forward.1']
    %17 = vsyncpa [#allocation3], 0
    // Predicated region
    $region2: #{gmvae_forward.1} parent=1 // pred_check
      _
    $region3: #{gmvae_forward.1} parent=1 // pred_check_branch
      %19 = sbr.rel (0) target = $region5
    $region4: #{gmvae_forward.1} parent=1 // pred_region
      _
    $region5: #{gmvae_forward.1} parent=1 // pred_fallthru
      _
    // Predicated region
    $region6: #{gmvae_forward.1} parent=1 // pred_check
      _
    $region7: #{gmvae_forward.1} parent=1 // pred_check_branch
      %21 = sbr.rel (0) target = $region9
    $region8: #{gmvae_forward.1} parent=1 // pred_region
      _
    $region9: #{gmvae_forward.1} parent=1 // pred_fallthru
      _
    // Predicated region
    $region10: #{gmvae_forward.1} parent=1 // pred_check
      _
    $region11: #{gmvae_forward.1} parent=1 // pred_check_branch
      %23 = sbr.rel (0) target = $region13
    $region12: #{gmvae_forward.1} parent=1 // pred_region
      _
    $region13: #{gmvae_forward.1} parent=1 // pred_fallthru
      _
    // Predicated region
    $region14: #{gmvae_forward.1} parent=1 // pred_check
      _
    $region15: #{gmvae_forward.1} parent=1 // pred_check_branch
      %25 = sbr.rel (0) target = $region17
    $region16: #{gmvae_forward.1} parent=1 // pred_region
      _
    $region17: #{gmvae_forward.1} parent=1 // pred_fallthru
      _
    // Predicated region
    $region18: #{gmvae_forward.1} parent=1 // pred_check
      _
    $region19: #{gmvae_forward.1} parent=1 // pred_check_branch
      %27 = sbr.rel (0) target = $region21
    $region20: #{gmvae_forward.1} parent=1 // pred_region
      _
    $region21: #{gmvae_forward.1} parent=1 // pred_fallthru
      _
    // Predicated region
    $region22: #{gmvae_forward.1} parent=1 // pred_check
      _
    $region23: #{gmvae_forward.1} parent=1 // pred_check_branch
      %29 = sbr.rel (0) target = $region25
    $region24: #{gmvae_forward.1} parent=1 // pred_region
      _
    $region25: #{gmvae_forward.1} parent=1 // pred_fallthru
      _
    // Predicated region
    $region26: #{gmvae_forward.1} parent=1 // pred_check
      _
    $region27: #{gmvae_forward.1} parent=1 // pred_check_branch
      %31 = sbr.rel (0) target = $region29
    $region28: #{gmvae_forward.1} parent=1 // pred_region
      _
    $region29: #{gmvae_forward.1} parent=1 // pred_fallthru
      _
    // Predicated region
    $region30: #{gmvae_forward.1} parent=1 // pred_check
      _
    $region31: #{gmvae_forward.1} parent=1 // pred_check_branch
      %33 = sbr.rel (0) target = $region33
    $region32: #{gmvae_forward.1} parent=1 // pred_region
      _
    $region33: #{gmvae_forward.1} parent=1 // pred_fallthru
      _
    // Predicated region
    $region34: #{gmvae_forward.1} parent=1 // pred_check
      _
    $region35: #{gmvae_forward.1} parent=1 // pred_check_branch
      %35 = sbr.rel (0) target = $region37
    $region36: #{gmvae_forward.1} parent=1 // pred_region
      _
    $region37: #{gmvae_forward.1} parent=1 // pred_fallthru
      _
    // Predicated region
    $region38: #{gmvae_forward.1} parent=1 // pred_check
      _
    $region39: #{gmvae_forward.1} parent=1 // pred_check_branch
      %37 = sbr.rel (0) target = $region41
    $region40: #{gmvae_forward.1} parent=1 // pred_region
      _
    $region41: #{gmvae_forward.1} parent=1 // pred_fallthru
      _
    %v39 = vld [vmem:[%s0] sm:$0xf]
    %v40 = vld [vmem:[%s1] sm:$0xf]
    %v41 = vunpack.c.l.bf16 %v40
    %v42 = vld [vmem:[%s2] sm:$0xff]
    %v43 = vld [vmem:[%s2 + $0x8] sm:$0xf]
    %v44 = vld [vmem:[%s2 + $0xc] sm:$0xff]
    %v45 = vld [vmem:[%s2 + $0x14] sm:$0xf]
    %v46 = vld [vmem:[%s2 + $0x18] sm:$0xff]
    %v47 = vld [vmem:[%s2 + $0x20] sm:$0xf]
    %v48 = vld [vmem:[%s2 + $0x24] sm:$0xff]
    %v49 = vld [vmem:[%s2 + $0x2c] sm:$0xf]
    %v50 = vld [vmem:[%s3] sm:$0x7]
    %v52 = vperm.slane %v50, 0
    %v53 = vperm.slane %v50, 1
    %v54 = vperm.slane %v50, 2
    %v66 = vunpack.c.l.b16 %v42
    %v67 = vunpack.c.h.b16 %v42
    %v68 = vunpack.c.l.b16 %v43
    %v69 = vunpack.c.l.b16 %v44
    %v70 = vunpack.c.h.b16 %v44
    %v71 = vunpack.c.l.b16 %v45
    %v72 = vunpack.c.l.b16 %v46
    %v73 = vunpack.c.h.b16 %v46
    %v74 = vunpack.c.l.b16 %v47
    %v75 = vunpack.c.l.b16 %v48
    %v76 = vunpack.c.h.b16 %v48
    %v77 = vunpack.c.l.b16 %v49
    %v78 = vpack.c.b16 %v69, %v66
    %v79 = vpack.c.b16 %v70, %v67
    %v80 = vpack.c.b16 %v71, %v68
    %v81 = vpack.c.b16 %v75, %v72
    %v82 = vpack.c.b16 %v76, %v73
    %v83 = vpack.c.b16 %v77, %v74
    %vm90 = vcmask 261120
    %v92 = vsel %vm90, %v39, 0
    %94 = vmatpush.bf16.msra.mxu0 0
    %95 = vmatpush.bf16.msra.mxu0 0
    %96 = vmatpush.bf16.msra.mxu0 0
    %97 = vmatpush.bf16.msra.mxu0 0
    %98 = vmatpush.bf16.msra.mxu0 0
    %99 = vmatpush.bf16.msra.mxu0 0
    %100 = vmatpush.bf16.msra.mxu0 %v81
    %101 = vmatpush.bf16.msra.mxu0 %v78
    %102 = vmatmul.bf16.gmra.mxu0 %v92
    %v103 = vpop.f32.mrf.mxu0
    %v104 = vadd.f32 %v52, %v103
    %v105 = vpop.f32.mrf.mxu0
    %106 = vdwg.mxu0
    %107 = vmatpush.bf16.msra.mxu0 0
    %108 = vmatpush.bf16.msra.mxu0 0
    %109 = vmatpush.bf16.msra.mxu0 0
    %110 = vmatpush.bf16.msra.mxu0 0
    %111 = vmatpush.bf16.msra.mxu0 0
    %112 = vmatpush.bf16.msra.mxu0 0
    %113 = vmatpush.bf16.msra.mxu0 %v82
    %114 = vmatpush.bf16.msra.mxu0 %v79
    %115 = vmatmul.bf16.gmra.mxu0 %v92
    %v116 = vpop.f32.mrf.mxu0
    %v117 = vadd.f32 %v53, %v116
    %v118 = vpop.f32.mrf.mxu0
    %119 = vdwg.mxu0
    %120 = vmatpush.bf16.msra.mxu0 0
    %121 = vmatpush.bf16.msra.mxu0 0
    %122 = vmatpush.bf16.msra.mxu0 0
    %123 = vmatpush.bf16.msra.mxu0 0
    %124 = vmatpush.bf16.msra.mxu0 0
    %125 = vmatpush.bf16.msra.mxu0 0
    %126 = vmatpush.bf16.msra.mxu0 %v83
    %127 = vmatpush.bf16.msra.mxu0 %v80
    %128 = vmatmul.bf16.gmra.mxu0 %v92
    %v129 = vpop.f32.mrf.mxu0
    %v130 = vadd.f32 %v54, %v129
    %v131 = vpop.f32.mrf.mxu0
    %132 = vdwg.mxu0
    %v133 = vmax.f32 %v130, 0.0
    %v134 = vmul.f32 %v117, 0.5
    %v135 = vmul.f32 %v134, 1.442695
    %v136 = vpow.pop %v135
    %v137 = vmul.f32 %v136, %v41
    %v138 = vadd.f32 %v104, %v137
    %139 = vst [vmem:[#allocation2] sm:$0xff] %v138
    %v140 = vpack.c.bf16 %v133, %v133
    %v141 = vld [vmem:[%s4] sm:$0xf]
    %v142 = vld [vmem:[%s4 + $0x4] sm:$0xf]
    %v143 = vld [vmem:[%s4 + $0x8] sm:$0xf]
    %v144 = vld [vmem:[%s4 + $0xc] sm:$0xf]
    %v145 = vld [vmem:[%s4 + $0x10] sm:$0xf]
    %v146 = vld [vmem:[%s4 + $0x14] sm:$0xf]
    %v147 = vld [vmem:[%s4 + $0x18] sm:$0xf]
    %v148 = vld [vmem:[%s4 + $0x1c] sm:$0xf]
    %v149 = vld [vmem:[%s4 + $0x20] sm:$0xf]
    %v150 = vld [vmem:[%s4 + $0x24] sm:$0xf]
    %v151 = vld [vmem:[%s4 + $0x28] sm:$0xf]
    %v152 = vld [vmem:[%s4 + $0x2c] sm:$0xf]
    %v153 = vld [vmem:[%s4 + $0x30] sm:$0xf]
    %v154 = vld [vmem:[%s4 + $0x34] sm:$0xf]
    %v155 = vld [vmem:[%s4 + $0x38] sm:$0xf]
    %v156 = vld [vmem:[%s4 + $0x3c] sm:$0xf]
    %v157 = vld [vmem:[%s5] sm:$0x1]
    %v159 = vperm.slane %v157, 0
    %v177 = vunpack.c.l.b16 %v141
    %v178 = vunpack.c.l.b16 %v142
    %v179 = vunpack.c.l.b16 %v143
    %v180 = vunpack.c.l.b16 %v144
    %v181 = vunpack.c.l.b16 %v145
    %v182 = vunpack.c.l.b16 %v146
    %v183 = vunpack.c.l.b16 %v147
    %v184 = vunpack.c.l.b16 %v148
    %v185 = vunpack.c.l.b16 %v149
    %v186 = vunpack.c.l.b16 %v150
    %v187 = vunpack.c.l.b16 %v151
    %v188 = vunpack.c.l.b16 %v152
    %v189 = vunpack.c.l.b16 %v153
    %v190 = vunpack.c.l.b16 %v154
    %v191 = vunpack.c.l.b16 %v155
    %v192 = vunpack.c.l.b16 %v156
    %v193 = vpack.c.b16 %v178, %v177
    %v194 = vpack.c.b16 %v180, %v179
    %v195 = vpack.c.b16 %v182, %v181
    %v196 = vpack.c.b16 %v184, %v183
    %v197 = vpack.c.b16 %v186, %v185
    %v198 = vpack.c.b16 %v188, %v187
    %v199 = vpack.c.b16 %v190, %v189
    %v200 = vpack.c.b16 %v192, %v191
    %209 = vmatpush.bf16.msra.mxu0 %v200
    %210 = vmatpush.bf16.msra.mxu0 %v199
    %211 = vmatpush.bf16.msra.mxu0 %v198
    %212 = vmatpush.bf16.msra.mxu0 %v197
    %213 = vmatpush.bf16.msra.mxu0 %v196
    %214 = vmatpush.bf16.msra.mxu0 %v195
    %215 = vmatpush.bf16.msra.mxu0 %v194
    %216 = vmatpush.bf16.msra.mxu0 %v193
    %217 = vmatmul.bf16.gmra.mxu0 %v140
    %v218 = vpop.f32.mrf.mxu0
    %v219 = vadd.f32 %v159, %v218
    %v220 = vpop.f32.mrf.mxu0
    %221 = vdwg.mxu0
    %vm222 = vcmask 64512
    %v223 = vsel %vm222, %v219, -inf
    %224 = vmax.xlane.f32.xlu0 %v223
    %v225 = vpop.xlane.xlu0 %224
    %v226 = vsub.f32 %v219, %v225
    %v227 = vmul.f32 %v226, 1.442695
    %v228 = vpow.pop %v227
    %v229 = vsel %vm222, %v228, 0.0
    %230 = vadd.xlane.f32.xlu0 %v229
    %v231 = vpop.xlane.xlu0 %230
    %v232 = vrcp.pop %v231
    %v233 = vmul.f32 %v228, %v232
    %v234 = vld [vmem:[%s6] sm:$0xff]
    %v235 = vld [vmem:[%s6 + $0x8] sm:$0xff]
    %v236 = vld [vmem:[%s6 + $0x10] sm:$0xff]
    %v237 = vld [vmem:[%s6 + $0x18] sm:$0xff]
    %v238 = vld [vmem:[%s6 + $0x20] sm:$0xff]
    %v239 = vld [vmem:[%s6 + $0x28] sm:$0xff]
    %v240 = vld [vmem:[%s6 + $0x30] sm:$0xff]
    %v241 = vld [vmem:[%s6 + $0x38] sm:$0xff]
    %v242 = vld [vmem:[%s6 + $0x40] sm:$0xff]
    %v243 = vld [vmem:[%s6 + $0x48] sm:$0xff]
    %v244 = vld [vmem:[%s6 + $0x50] sm:$0xff]
    %v245 = vld [vmem:[%s6 + $0x58] sm:$0xff]
    %v246 = vld [vmem:[%s6 + $0x60] sm:$0xff]
    %v247 = vld [vmem:[%s6 + $0x68] sm:$0xff]
    %v248 = vld [vmem:[%s6 + $0x70] sm:$0xff]
    %v249 = vld [vmem:[%s6 + $0x78] sm:$0xff]
    %v250 = vld [vmem:[%s7] sm:$0xff]
    %v251 = vld [vmem:[%s7 + $0x8] sm:$0xff]
    %v252 = vld [vmem:[%s7 + $0x10] sm:$0xff]
    %v253 = vld [vmem:[%s7 + $0x18] sm:$0xff]
    %v254 = vld [vmem:[%s7 + $0x20] sm:$0xff]
    %v255 = vld [vmem:[%s7 + $0x28] sm:$0xff]
    %v256 = vld [vmem:[%s7 + $0x30] sm:$0xff]
    %v257 = vld [vmem:[%s7 + $0x38] sm:$0xff]
    %v258 = vld [vmem:[%s7 + $0x40] sm:$0xff]
    %v259 = vld [vmem:[%s7 + $0x48] sm:$0xff]
    %v260 = vld [vmem:[%s7 + $0x50] sm:$0xff]
    %v261 = vld [vmem:[%s7 + $0x58] sm:$0xff]
    %v262 = vld [vmem:[%s7 + $0x60] sm:$0xff]
    %v263 = vld [vmem:[%s7 + $0x68] sm:$0xff]
    %v264 = vld [vmem:[%s7 + $0x70] sm:$0xff]
    %v265 = vld [vmem:[%s7 + $0x78] sm:$0xff]
    %v266 = vld [vmem:[%s8] sm:$0x1]
    %v267 = vld [vmem:[%s9] sm:$0x1]
    %v268 = vmul.f32 %v138, %v138
    %v269 = vmul.f32 %v104, %v104
    %v270 = vmul.f32 %v136, %v136
    %271 = vmatpush.msra.mxu0 %v249
    %272 = vmatpush.msra.mxu0 %v248
    %273 = vmatpush.msra.mxu0 %v247
    %274 = vmatpush.msra.mxu0 %v246
    %275 = vmatpush.msra.mxu0 %v245
    %276 = vmatpush.msra.mxu0 %v244
    %277 = vmatpush.msra.mxu0 %v243
    %278 = vmatpush.msra.mxu0 %v242
    %279 = vmatpush.msra.mxu0 %v241
    %280 = vmatpush.msra.mxu0 %v240
    %281 = vmatpush.msra.mxu0 %v239
    %282 = vmatpush.msra.mxu0 %v238
    %283 = vmatpush.msra.mxu0 %v237
    %284 = vmatpush.msra.mxu0 %v236
    %285 = vmatpush.msra.mxu0 %v235
    %286 = vmatpush.msra.mxu0 %v234
    %287 = vmatmul.f32.gmra.mxu0 %v268
    %v288 = vpop.f32.mrf.mxu0
    %v289 = vadd.f32 0.0, %v288
    %290 = vmatmul.f32.gmra.mxu0 %v269
    %v291 = vpop.f32.mrf.mxu0
    %v292 = vadd.f32 0.0, %v291
    %293 = vmatmul.f32.gmra.mxu0 %v270
    %v294 = vpop.f32.mrf.mxu0
    %v295 = vadd.f32 0.0, %v294
    %296 = vdwg.mxu0
    %297 = vmatpush.msra.mxu0 %v265
    %298 = vmatpush.msra.mxu0 %v264
    %299 = vmatpush.msra.mxu0 %v263
    %300 = vmatpush.msra.mxu0 %v262
    %301 = vmatpush.msra.mxu0 %v261
    %302 = vmatpush.msra.mxu0 %v260
    %303 = vmatpush.msra.mxu0 %v259
    %304 = vmatpush.msra.mxu0 %v258
    %305 = vmatpush.msra.mxu0 %v257
    %306 = vmatpush.msra.mxu0 %v256
    %307 = vmatpush.msra.mxu0 %v255
    %308 = vmatpush.msra.mxu0 %v254
    %309 = vmatpush.msra.mxu0 %v253
    %310 = vmatpush.msra.mxu0 %v252
    %311 = vmatpush.msra.mxu0 %v251
    %312 = vmatpush.msra.mxu0 %v250
    %313 = vmatmul.f32.gmra.mxu0 %v138
    %v314 = vpop.f32.mrf.mxu0
    %v315 = vadd.f32 0.0, %v314
    %316 = vmatmul.f32.gmra.mxu0 %v104
    %v317 = vpop.f32.mrf.mxu0
    %v318 = vadd.f32 0.0, %v317
    %319 = vdwg.mxu0
    %v320 = vadd.f32 %v289, %v315
    %v322 = vperm.slane %v267, 0
    %v324 = vadd.f32 %v320, %v322
    %v325 = vadd.f32 %v292, %v318
    %v326 = vadd.f32 %v325, %v322
    %v327 = vmul.f32 %v324, 0.5
    %v329 = vperm.slane %v266, 0
    %v331 = vsub.f32 %v329, %v327
    %v332 = vsel %vm222, %v331, -inf
    %333 = vmax.xlane.f32.xlu0 %v332
    %v334 = vpop.xlane.xlu0 %333
    %v335 = vsub.f32 %v331, %v334
    %v336 = vmul.f32 %v335, 1.442695
    %v337 = vpow.pop %v336
    %v338 = vsel %vm222, %v337, 0.0
    %339 = vadd.xlane.f32.xlu0 %v338
    %v340 = vpop.xlane.xlu0 %339
    %v341 = vadd.f32 %v340, 1e-10
    %v342 = vrcp.pop %v341
    %v343 = vmul.f32 %v337, %v342
    %v344 = vsel %vm222, %v343, -inf
    %345 = vmax.xlane.f32.xlu0 %v344
    %v346 = vpop.xlane.xlu0 %345
    %v347 = vsub.f32 %v343, %v346
    %v348 = vmul.f32 %v347, 1.442695
    %v349 = vpow.pop %v348
    %v350 = vsel %vm222, %v349, 0.0
    %351 = vadd.xlane.f32.xlu0 %v350
    %v352 = vpop.xlane.xlu0 %351
    %v353 = vrcp.pop %v352
    %v354 = vmul.f32 %v349, %v353
    %v355 = vadd.f32 %v326, %v295
    %v356 = vmul.f32 %v355, 0.5
    %v357 = vsub.f32 %v329, %v356
    %v358 = vmul.f32 %v357, %v233
    %v359 = vadd.f32 %v233, 1e-10
    %v360 = vlog2.pop %v359
    %v361 = vmul.f32 %v360, 0.6931472
    %v362 = vmul.f32 %v233, %v361
    %v363 = vsub.f32 %v358, %v362
    %v364 = vadd.f32 %v354, 1e-10
    %v365 = vlog2.pop %v364
    %v366 = vmul.f32 %v365, 0.6931472
    %v367 = vmul.f32 %v233, %v366
    %v368 = vsub.f32 %v363, %v367
    %v369 = vsel %vm222, %v368, 0.0
    %370 = vadd.xlane.f32.xlu0 %v369
    %v371 = vpop.xlane.xlu0 %370
    %v372 = vrot.slane %v371, 4
    %v373 = vadd.f32 %v371, %v372
    %v374 = vrot.slane %v373, 2
    %v375 = vadd.f32 %v373, %v374
    %v376 = vrot.slane %v375, 1
    %v377 = vadd.f32 %v375, %v376
    %s378 = vtos %v377
    %v379 = vstv %s378
    %380 = vst [vmem:[%s11] sm:$0xff] %v379
    // Predicated region
    $region42: #{gmvae_forward.1} parent=1 // pred_check
      _
    $region43: #{gmvae_forward.1} parent=1 // pred_check_branch
      %382 = sbr.rel (0) target = $region45
    $region44: #{gmvae_forward.1} parent=1 // pred_region
      %384 = vsyncadd [#allocation3], 0
      %s386 = sshll.u32 [#allocation2], 4
      %s387 = int_to_ptr.vmem [resolvable:$true] %s386
      %s388 = sshll.u32 %s10, 4
      %s389 = int_to_ptr.hbm [resolvable:$true] %s388
      %391 = dma.vmem_to_hbm [thread:$0]  %s387, 128, %s389, [#allocation3]
    $region45: #{gmvae_forward.1} parent=1 // pred_fallthru
      _
    // Predicated region
    $region46: #{gmvae_forward.1} parent=1 // pred_check
      _
    $region47: #{gmvae_forward.1} parent=1 // pred_check_branch
      %393 = sbr.rel (0) target = $region49
    $region48: #{gmvae_forward.1} parent=1 // pred_region
      _
    $region49: #{gmvae_forward.1} parent=1 // pred_fallthru
      _
    // Predicated region
    $region50: #{gmvae_forward.1} parent=1 // pred_check
      _
    $region51: #{gmvae_forward.1} parent=1 // pred_check_branch
      %395 = sbr.rel (0) target = $region53
    $region52: #{gmvae_forward.1} parent=1 // pred_region
      %397 = dma.done [#allocation3], 128
    $region53: #{gmvae_forward.1} parent=1 // pred_fallthru
      _
    // Predicated region
    $region54: #{gmvae_forward.1} parent=1 // pred_check
      _
    $region55: #{gmvae_forward.1} parent=1 // pred_check_branch
      %399 = sbr.rel (0) target = $region57
    $region56: #{gmvae_forward.1} parent=1 // pred_region
      _
    $region57: #{gmvae_forward.1} parent=1 // pred_fallthru
      _
    %400 = vsyncpa [#allocation3], 1

</llo_original>
